<compile_context>
chip_gen: v7x
topology: tpu7x:2x2x1
jax: 0.10.0
libtpu: 0.0.40
codegen_flags: <defaults>
</compile_context>

<pallas_src>
import functools

import numpy as np
import jax
import jax.numpy as jnp
from jax.experimental import pallas as pl
from jax.experimental.pallas import tpu as pltpu


# --------------------------------------------------------------------------- #
# Kernel
# --------------------------------------------------------------------------- #
def _joint_loss_kernel(pred_ref, targ_ref, basis_ref, mask_ref,
                       out_time_ref, out_freq_ref, *, nf_pad):
    n = pred_ref.shape[1]

    pred_in = pred_ref[...]                      # native dtype (f32 or bf16)
    targ_in = targ_ref[...]
    pred = pred_in.astype(jnp.float32)           # VPU/EUP math stays in f32
    targ = targ_in.astype(jnp.float32)

    # ---- time-domain per-lane partials (rows reduced; lanes reduced in XLA) -
    diff = pred - targ
    time_p = jnp.sum(diff * diff, axis=0, keepdims=True)                # (1, N)
    cdiff = jnp.log1p(jnp.abs(pred)) - jnp.log1p(jnp.abs(targ))
    ctime_p = jnp.sum(cdiff * cdiff, axis=0, keepdims=True)             # (1, N)

    # ---- rFFT magnitudes: two weight-stationary MXU dots (no scratch) -------
    basis = basis_ref[...]                       # (N, 2*NF_PAD), VMEM-resident
    p_ri = jnp.dot(pred_in.astype(basis.dtype), basis,
                   preferred_element_type=jnp.float32)                  # (TM, 2*NF_PAD)
    t_ri = jnp.dot(targ_in.astype(basis.dtype), basis,
                   preferred_element_type=jnp.float32)
    pf = jnp.sqrt(p_ri[:, :nf_pad] * p_ri[:, :nf_pad]
                  + p_ri[:, nf_pad:] * p_ri[:, nf_pad:])                # (TM, NF_PAD)
    tf = jnp.sqrt(t_ri[:, :nf_pad] * t_ri[:, :nf_pad]
                  + t_ri[:, nf_pad:] * t_ri[:, nf_pad:])

    # ---- frequency-domain per-lane partials ----------------------------------
    fdiff = pf - tf
    freq_p = jnp.sum(fdiff * fdiff, axis=0, keepdims=True)              # (1, NF_PAD)
    even_p = jnp.sum(pf * mask_ref[...], axis=0, keepdims=True)         # (1, NF_PAD)
    cfd = jnp.log1p(pf) - jnp.log1p(tf)
    cfreq_p = jnp.sum(cfd * cfd, axis=0, keepdims=True)                 # (1, NF_PAD)

    # ---- emit lane-dense (8, X) partial tiles: row j holds term j -----------
    rt = jax.lax.broadcasted_iota(jnp.int32, (8, n), 0)
    out_time_ref[...] = (jnp.where(rt == 0, time_p, 0.0)
                         + jnp.where(rt == 1, ctime_p, 0.0))
    rf = jax.lax.broadcasted_iota(jnp.int32, (8, nf_pad), 0)
    out_freq_ref[...] = (jnp.where(rf == 0, freq_p, 0.0)
                         + jnp.where(rf == 1, even_p, 0.0)
                         + jnp.where(rf == 2, cfreq_p, 0.0))


# --------------------------------------------------------------------------- #
# Host-side helpers
# --------------------------------------------------------------------------- #
@functools.lru_cache(maxsize=8)
def _dft_basis_and_mask_host(n):
    """Host (numpy) fused [cos|sin] DFT basis and even-harmonic mask.

    Cached as numpy so the cache is device-agnostic; conversion to a device
    array (and bf16) happens per call and is constant-folded under jit.
    """
    n_freq = n // 2 + 1
    nf_pad = max(128, ((n_freq + 127) // 128) * 128)
    nn = np.arange(n, dtype=np.float64)[:, None]
    kk = np.arange(nf_pad, dtype=np.float64)[None, :]
    ang = 2.0 * np.pi * nn * kk / n
    valid = kk < n_freq                          # zero the padded frequency cols
    cos_m = np.where(valid, np.cos(ang), 0.0)
    sin_m = np.where(valid, np.sin(ang), 0.0)
    basis = np.concatenate([cos_m, sin_m], axis=1).astype(np.float32)   # (N, 2*NF_PAD)
    k = np.arange(nf_pad)
    mask = (((k % 2) == 0) & (k < n_freq)).astype(np.float32)[None, :]  # (1, NF_PAD)
    return basis, mask, n_freq, nf_pad


def _vmem_capacity_bytes():
    try:
        return int(pltpu.get_tpu_info().vmem_capacity_bytes)
    except Exception:
        return 128 << 20     # v5e/v6e default if the query is unavailable


def _tile_and_vmem(m, n, nf_pad, in_itemsize, basis_bytes, mask_bytes,
                   basis_buffers):
    """Generation-aware TM (multiple of 16) and matching scoped-VMEM limit."""
    cap = _vmem_capacity_bytes()
    budget = int(cap * 0.55)         # ~36 MiB on v7x (64 MiB), ~70 MiB on v5e/v6e
    limit_cap = int(cap * 0.75)      # headroom for Mosaic-internal scratch

    resident = (basis_bytes + mask_bytes) * basis_buffers
    resident += 2 * 8 * (n + nf_pad) * 4            # double-buffered output tiles
    per_row = (2 * 2 * n * in_itemsize              # pred/targ tiles, double-buffered
               + 2 * n * 2                          # bf16 MXU LHS casts
               + 4 * n * 4                          # f32 upcasts + elementwise temps
               + 8 * nf_pad * 4)                    # dot results + magnitudes + temps
    tm = (budget - resident) // max(per_row, 1)
    # Bigger tiles amortize per-step overhead on v5e/v6e (128 MiB VMEM); cap
    # lower on v7x (64 MiB per TensorCore).
    tm_cap = 2048 if cap >= (96 << 20) else 512
    tm = int(max(16, min(tm_cap, tm)))
    tm -= tm % 16
    tm = max(16, tm)
    m_ceil = ((m + 15) // 16) * 16
    # Keep >= 2 grid blocks when there are >= 32 rows so the "parallel" grid
    # axis actually shards across both v7x TensorCores (harmless on v5e/v6e).
    if m_ceil >= 32:
        half = (m_ceil // 2) - ((m_ceil // 2) % 16)
        tm = min(tm, max(16, half))
    tm = min(tm, m_ceil)
    vmem_limit = int(resident + tm * per_row + (8 << 20))
    vmem_limit = max(32 << 20, min(vmem_limit, limit_cap))
    return tm, vmem_limit


# --------------------------------------------------------------------------- #
# Public wrapper (forward pass of JointLoss)
# --------------------------------------------------------------------------- #
def joint_loss(pred, target, *, alpha=0.3, fft_weight=0.5,
               odd_order_weight=0.2, compress_weight=0.4,
               fft_basis_dtype=jnp.bfloat16):
    assert pred.shape == target.shape
    n = pred.shape[-1]
    m = int(np.prod(pred.shape[:-1])) if pred.ndim > 1 else 1

    # Stream inputs in their native dtype (bf16 stays bf16); everything else f32.
    if pred.dtype == jnp.bfloat16 and target.dtype == jnp.bfloat16:
        dt = jnp.bfloat16
    else:
        dt = jnp.float32
    pred2 = pred.reshape(m, n).astype(dt)
    targ2 = target.reshape(m, n).astype(dt)
    in_itemsize = pred2.dtype.itemsize

    basis_np, mask_np, n_freq, nf_pad = _dft_basis_and_mask_host(n)
    basis_bytes = basis_np.size * jnp.dtype(fft_basis_dtype).itemsize
    mask_bytes = mask_np.size * 4

    # Single-buffer the constant-index resident operands once they are large
    # enough to matter (their index_map never changes; double-buffering them
    # only wastes VMEM -- critical at large N on v7x's 64 MiB per core).
    single_buffer_consts = basis_bytes >= (1 << 20)
    basis_buffers = 1 if single_buffer_consts else 2

    tm, vmem_limit = _tile_and_vmem(m, n, nf_pad, in_itemsize,
                                    basis_bytes, mask_bytes, basis_buffers)
    m_pad = ((m + tm - 1) // tm) * tm
    if m_pad > m:
        padw = ((0, m_pad - m), (0, 0))
        pred2 = jnp.pad(pred2, padw)      # zero rows contribute 0 to every sum
        targ2 = jnp.pad(targ2, padw)
    num_blocks = m_pad // tm

    # bf16 basis feeds the bf16-native MXU (f32 accumulation) and halves the
    # resident footprint; pass fft_basis_dtype=jnp.float32 for very large N /
    # high-dynamic-range signals if tighter FFT accuracy is required.
    basis = jnp.asarray(basis_np, dtype=fft_basis_dtype)
    mask = jnp.asarray(mask_np)

    const_kwargs = ({"pipeline_mode": pl.Buffered(1)}
                    if single_buffer_consts else {})
    # TODO(synk): when VMEM headroom allows, sweep pipeline_mode=pl.Buffered(3)
    # on the two streamed input specs below to hide exposed DMA at small N.
    in_specs = [
        pl.BlockSpec((tm, n), lambda i: (i, 0)),                          # pred tile
        pl.BlockSpec((tm, n), lambda i: (i, 0)),                          # target tile
        pl.BlockSpec((n, 2 * nf_pad), lambda i: (0, 0), **const_kwargs),  # basis
        pl.BlockSpec((1, nf_pad), lambda i: (0, 0), **const_kwargs),      # mask
    ]
    out_specs = [
        pl.BlockSpec((8, n), lambda i: (i, 0)),
        pl.BlockSpec((8, nf_pad), lambda i: (i, 0)),
    ]
    out_shape = (
        jax.ShapeDtypeStruct((num_blocks * 8, n), jnp.float32),
        jax.ShapeDtypeStruct((num_blocks * 8, nf_pad), jnp.float32),
    )

    cost = pl.CostEstimate(
        flops=int(2 * 2 * m_pad * n * (2 * nf_pad)),
        transcendentals=int(2 * m_pad * n + 3 * m_pad * nf_pad),
        bytes_accessed=int(2 * m_pad * n * in_itemsize
                           + basis_bytes + mask_bytes
                           + num_blocks * 8 * (n + nf_pad) * 4),
    )

    kernel = functools.partial(_joint_loss_kernel, nf_pad=nf_pad)
    part_time, part_freq = pl.pallas_call(
        kernel,
        out_shape=out_shape,
        grid_spec=pltpu.PrefetchScalarGridSpec(
            num_scalar_prefetch=0,
            grid=(num_blocks,),
            in_specs=in_specs,
            out_specs=out_specs,
        ),
        compiler_params=pltpu.CompilerParams(
            dimension_semantics=("parallel",),
            vmem_limit_bytes=vmem_limit),
        cost_estimate=cost,
    )(pred2, targ2, basis, mask)

    # Tiny XLA epilogue: cross-lane + cross-block reduction and weighting.
    ptile = part_time.reshape(num_blocks, 8, n)
    ftile = part_freq.reshape(num_blocks, 8, nf_pad)
    time_count = jnp.float32(m * n)
    freq_count = jnp.float32(m * n_freq)
    time_loss = jnp.sum(ptile[:, 0, :]) / time_count
    ctime_loss = jnp.sum(ptile[:, 1, :]) / time_count
    freq_loss = jnp.sum(ftile[:, 0, :]) / freq_count
    even_loss = jnp.sum(ftile[:, 1, :]) / freq_count
    cfreq_loss = jnp.sum(ftile[:, 2, :]) / freq_count
    return ((1.0 - fft_weight) * time_loss
            + fft_weight * freq_loss
            + alpha * (odd_order_weight * even_loss
                       + compress_weight * (ctime_loss + cfreq_loss)))


# --------------------------------------------------------------------------- #
# Pure-JAX reference (mirrors the PyTorch forward)
# --------------------------------------------------------------------------- #
def joint_loss_ref(pred, target, *, alpha=0.3, fft_weight=0.5,
                   odd_order_weight=0.2, compress_weight=0.4):
    pred = pred.astype(jnp.float32)
    target = target.astype(jnp.float32)
    time_loss = jnp.mean((pred - target) ** 2)
    pred_fft = jnp.abs(jnp.fft.rfft(pred))
    target_fft = jnp.abs(jnp.fft.rfft(target))
    freq_loss = jnp.mean((pred_fft - target_fft) ** 2)
    n_freq = pred_fft.shape[-1]
    even_mask = jnp.zeros((n_freq,), jnp.float32).at[::2].set(1.0)
    even_loss = jnp.mean(pred_fft * even_mask)
    ctime = jnp.mean((jnp.log1p(jnp.abs(pred)) - jnp.log1p(jnp.abs(target))) ** 2)
    cfreq = jnp.mean((jnp.log1p(pred_fft) - jnp.log1p(target_fft)) ** 2)
    return ((1 - fft_weight) * time_loss + fft_weight * freq_loss
            + alpha * (odd_order_weight * even_loss
                       + compress_weight * (ctime + cfreq)))


if __name__ == "__main__":
    key = jax.random.PRNGKey(0)
    k1, k2 = jax.random.split(key)
    batch, channels, seq = 2, 4, 128
    pred = jax.random.normal(k1, (batch, channels, seq), dtype=jnp.float32)
    target = jax.random.normal(k2, (batch, channels, seq), dtype=jnp.float32)

    out = jax.block_until_ready(joint_loss(pred, target))
    ref = jax.block_until_ready(joint_loss_ref(pred, target))

    # Tolerance reflects the intentional bf16 quantization of the DFT-basis
    # matmul operands (f32 accumulation); all other math is f32.
    np.testing.assert_allclose(np.asarray(out), np.asarray(ref),
                               rtol=5e-3, atol=5e-3)
    print("KERNEL_OK")
</pallas_src>

<mosaic_0001>
module attributes {stable_mosaic.version = 11 : i64} {
  func.func @_joint_loss_kernel(%arg0: i32, %arg1: memref<16x128xf32, #tpu.memory_space<vmem>>, %arg2: memref<16x128xf32, #tpu.memory_space<vmem>>, %arg3: memref<128x256xbf16, #tpu.memory_space<vmem>>, %arg4: memref<1x128xf32, #tpu.memory_space<vmem>>, %arg5: memref<8x128xf32, #tpu.memory_space<vmem>>, %arg6: memref<8x128xf32, #tpu.memory_space<vmem>>) attributes {dimension_semantics = [#tpu.dimension_semantics<parallel>], iteration_bounds = array<i64: 1>, scalar_prefetch = 0 : i64, scratch_operands = 0 : i64, tpu.core_type = #tpu.core_type<tc>, window_params = [{transform_indices = @transform_0, window_bounds = array<i64: 16, 128>}, {transform_indices = @transform_1, window_bounds = array<i64: 16, 128>}, {pipeline_mode = #tpu.pipeline_mode<synchronous>, transform_indices = @transform_2, window_bounds = array<i64: 128, 256>}, {pipeline_mode = #tpu.pipeline_mode<synchronous>, transform_indices = @transform_3, window_bounds = array<i64: 1, 128>}, {transform_indices = @transform_4, window_bounds = array<i64: 8, 128>}, {transform_indices = @transform_5, window_bounds = array<i64: 8, 128>}]} {
    %c0 = arith.constant 0 : index
    %c0_0 = arith.constant 0 : index
    %0 = vector.load %arg1[%c0, %c0_0] : memref<16x128xf32, #tpu.memory_space<vmem>>, vector<16x128xf32>
    %c0_1 = arith.constant 0 : index
    %c0_2 = arith.constant 0 : index
    %1 = vector.load %arg2[%c0_1, %c0_2] : memref<16x128xf32, #tpu.memory_space<vmem>>, vector<16x128xf32>
    %2 = arith.subf %0, %1 : vector<16x128xf32>
    %3 = arith.mulf %2, %2 : vector<16x128xf32>
    %cst = arith.constant dense<0.000000e+00> : vector<128xf32>
    %4 = vector.multi_reduction <add>, %3, %cst [0] : vector<16x128xf32> to vector<128xf32>
    %5 = vector.shape_cast %4 : vector<128xf32> to vector<1x128xf32>
    %6 = math.absf %0 : vector<16x128xf32>
    %7 = math.log1p %6 : vector<16x128xf32>
    %8 = math.absf %1 : vector<16x128xf32>
    %9 = math.log1p %8 : vector<16x128xf32>
    %10 = arith.subf %7, %9 : vector<16x128xf32>
    %11 = arith.mulf %10, %10 : vector<16x128xf32>
    %cst_3 = arith.constant dense<0.000000e+00> : vector<128xf32>
    %12 = vector.multi_reduction <add>, %11, %cst_3 [0] : vector<16x128xf32> to vector<128xf32>
    %13 = vector.shape_cast %12 : vector<128xf32> to vector<1x128xf32>
    %c0_4 = arith.constant 0 : index
    %c0_5 = arith.constant 0 : index
    %14 = vector.load %arg3[%c0_4, %c0_5] : memref<128x256xbf16, #tpu.memory_space<vmem>>, vector<128x256xbf16>
    %15 = arith.truncf %0 : vector<16x128xf32> to vector<16x128xbf16>
    %cst_6 = arith.constant dense<0.000000e+00> : vector<16x256xf32>
    %16 = tpu.matmul %15, %14, %cst_6 {dimension_numbers = #tpu.dot_dimension_numbers<[1], [0], [0], [1], [0, 0, 1, 1], [], []>} : vector<16x128xbf16>, vector<128x256xbf16>, vector<16x256xf32> -> vector<16x256xf32>
    %17 = arith.truncf %1 : vector<16x128xf32> to vector<16x128xbf16>
    %cst_7 = arith.constant dense<0.000000e+00> : vector<16x256xf32>
    %18 = tpu.matmul %17, %14, %cst_7 {dimension_numbers = #tpu.dot_dimension_numbers<[1], [0], [0], [1], [0, 0, 1, 1], [], []>} : vector<16x128xbf16>, vector<128x256xbf16>, vector<16x256xf32> -> vector<16x256xf32>
    %19 = vector.extract_strided_slice %16 {offsets = [0, 0], sizes = [16, 128], strides = [1, 1]} : vector<16x256xf32> to vector<16x128xf32>
    %20 = vector.extract_strided_slice %16 {offsets = [0, 0], sizes = [16, 128], strides = [1, 1]} : vector<16x256xf32> to vector<16x128xf32>
    %21 = arith.mulf %19, %20 : vector<16x128xf32>
    %22 = vector.extract_strided_slice %16 {offsets = [0, 128], sizes = [16, 128], strides = [1, 1]} : vector<16x256xf32> to vector<16x128xf32>
    %23 = vector.extract_strided_slice %16 {offsets = [0, 128], sizes = [16, 128], strides = [1, 1]} : vector<16x256xf32> to vector<16x128xf32>
    %24 = arith.mulf %22, %23 : vector<16x128xf32>
    %25 = arith.addf %21, %24 : vector<16x128xf32>
    %26 = math.sqrt %25 : vector<16x128xf32>
    %27 = vector.extract_strided_slice %18 {offsets = [0, 0], sizes = [16, 128], strides = [1, 1]} : vector<16x256xf32> to vector<16x128xf32>
    %28 = vector.extract_strided_slice %18 {offsets = [0, 0], sizes = [16, 128], strides = [1, 1]} : vector<16x256xf32> to vector<16x128xf32>
    %29 = arith.mulf %27, %28 : vector<16x128xf32>
    %30 = vector.extract_strided_slice %18 {offsets = [0, 128], sizes = [16, 128], strides = [1, 1]} : vector<16x256xf32> to vector<16x128xf32>
    %31 = vector.extract_strided_slice %18 {offsets = [0, 128], sizes = [16, 128], strides = [1, 1]} : vector<16x256xf32> to vector<16x128xf32>
    %32 = arith.mulf %30, %31 : vector<16x128xf32>
    %33 = arith.addf %29, %32 : vector<16x128xf32>
    %34 = math.sqrt %33 : vector<16x128xf32>
    %35 = arith.subf %26, %34 : vector<16x128xf32>
    %36 = arith.mulf %35, %35 : vector<16x128xf32>
    %cst_8 = arith.constant dense<0.000000e+00> : vector<128xf32>
    %37 = vector.multi_reduction <add>, %36, %cst_8 [0] : vector<16x128xf32> to vector<128xf32>
    %38 = vector.shape_cast %37 : vector<128xf32> to vector<1x128xf32>
    %c0_9 = arith.constant 0 : index
    %c0_10 = arith.constant 0 : index
    %39 = vector.load %arg4[%c0_9, %c0_10] : memref<1x128xf32, #tpu.memory_space<vmem>>, vector<1x128xf32>
    %40 = vector.broadcast %39 : vector<1x128xf32> to vector<16x128xf32>
    %41 = arith.mulf %26, %40 : vector<16x128xf32>
    %cst_11 = arith.constant dense<0.000000e+00> : vector<128xf32>
    %42 = vector.multi_reduction <add>, %41, %cst_11 [0] : vector<16x128xf32> to vector<128xf32>
    %43 = vector.shape_cast %42 : vector<128xf32> to vector<1x128xf32>
    %44 = math.log1p %26 : vector<16x128xf32>
    %45 = math.log1p %34 : vector<16x128xf32>
    %46 = arith.subf %44, %45 : vector<16x128xf32>
    %47 = arith.mulf %46, %46 : vector<16x128xf32>
    %cst_12 = arith.constant dense<0.000000e+00> : vector<128xf32>
    %48 = vector.multi_reduction <add>, %47, %cst_12 [0] : vector<16x128xf32> to vector<128xf32>
    %49 = vector.shape_cast %48 : vector<128xf32> to vector<1x128xf32>
    %50 = tpu.iota {dimensions = array<i32: 0>} : vector<8x128xi32>
    %c0_i32 = arith.constant 0 : i32
    %51 = vector.broadcast %c0_i32 : i32 to vector<8x128xi32>
    %52 = arith.cmpi eq, %50, %51 : vector<8x128xi32>
    %cst_13 = arith.constant 0.000000e+00 : f32
    %53 = vector.shape_cast %5 : vector<1x128xf32> to vector<1x128xf32>
    %54 = vector.broadcast %53 : vector<1x128xf32> to vector<8x128xf32>
    %55 = vector.broadcast %cst_13 : f32 to vector<8x128xf32>
    %56 = arith.select %52, %54, %55 : vector<8x128xi1>, vector<8x128xf32>
    %c1_i32 = arith.constant 1 : i32
    %57 = vector.broadcast %c1_i32 : i32 to vector<8x128xi32>
    %58 = arith.cmpi eq, %50, %57 : vector<8x128xi32>
    %cst_14 = arith.constant 0.000000e+00 : f32
    %59 = vector.shape_cast %13 : vector<1x128xf32> to vector<1x128xf32>
    %60 = vector.broadcast %59 : vector<1x128xf32> to vector<8x128xf32>
    %61 = vector.broadcast %cst_14 : f32 to vector<8x128xf32>
    %62 = arith.select %58, %60, %61 : vector<8x128xi1>, vector<8x128xf32>
    %63 = arith.addf %56, %62 : vector<8x128xf32>
    %c0_15 = arith.constant 0 : index
    %c0_16 = arith.constant 0 : index
    %64 = vector.load %arg5[%c0_15, %c0_16] : memref<8x128xf32, #tpu.memory_space<vmem>>, vector<8x128xf32>
    tpu.vector_store %arg5[%c0_15, %c0_16], %63 {strides = array<i32>} : memref<8x128xf32, #tpu.memory_space<vmem>>, vector<8x128xf32>,
    %65 = tpu.iota {dimensions = array<i32: 0>} : vector<8x128xi32>
    %c0_i32_17 = arith.constant 0 : i32
    %66 = vector.broadcast %c0_i32_17 : i32 to vector<8x128xi32>
    %67 = arith.cmpi eq, %65, %66 : vector<8x128xi32>
    %cst_18 = arith.constant 0.000000e+00 : f32
    %68 = vector.shape_cast %38 : vector<1x128xf32> to vector<1x128xf32>
    %69 = vector.broadcast %68 : vector<1x128xf32> to vector<8x128xf32>
    %70 = vector.broadcast %cst_18 : f32 to vector<8x128xf32>
    %71 = arith.select %67, %69, %70 : vector<8x128xi1>, vector<8x128xf32>
    %c1_i32_19 = arith.constant 1 : i32
    %72 = vector.broadcast %c1_i32_19 : i32 to vector<8x128xi32>
    %73 = arith.cmpi eq, %65, %72 : vector<8x128xi32>
    %cst_20 = arith.constant 0.000000e+00 : f32
    %74 = vector.shape_cast %43 : vector<1x128xf32> to vector<1x128xf32>
    %75 = vector.broadcast %74 : vector<1x128xf32> to vector<8x128xf32>
    %76 = vector.broadcast %cst_20 : f32 to vector<8x128xf32>
    %77 = arith.select %73, %75, %76 : vector<8x128xi1>, vector<8x128xf32>
    %78 = arith.addf %71, %77 : vector<8x128xf32>
    %c2_i32 = arith.constant 2 : i32
    %79 = vector.broadcast %c2_i32 : i32 to vector<8x128xi32>
    %80 = arith.cmpi eq, %65, %79 : vector<8x128xi32>
    %cst_21 = arith.constant 0.000000e+00 : f32
    %81 = vector.shape_cast %49 : vector<1x128xf32> to vector<1x128xf32>
    %82 = vector.broadcast %81 : vector<1x128xf32> to vector<8x128xf32>
    %83 = vector.broadcast %cst_21 : f32 to vector<8x128xf32>
    %84 = arith.select %80, %82, %83 : vector<8x128xi1>, vector<8x128xf32>
    %85 = arith.addf %78, %84 : vector<8x128xf32>
    %c0_22 = arith.constant 0 : index
    %c0_23 = arith.constant 0 : index
    %86 = vector.load %arg6[%c0_22, %c0_23] : memref<8x128xf32, #tpu.memory_space<vmem>>, vector<8x128xf32>
    tpu.vector_store %arg6[%c0_22, %c0_23], %85 {strides = array<i32>} : memref<8x128xf32, #tpu.memory_space<vmem>>, vector<8x128xf32>,
    return
  }
  func.func @transform_0(%arg0: i32) -> (i32, i32) {
    %c0_i32 = arith.constant 0 : i32
    %c0_i32_0 = arith.constant 0 : i32
    return %arg0, %c0_i32 : i32, i32
  }
  func.func @transform_1(%arg0: i32) -> (i32, i32) {
    %c0_i32 = arith.constant 0 : i32
    %c0_i32_0 = arith.constant 0 : i32
    return %arg0, %c0_i32 : i32, i32
  }
  func.func @transform_2(%arg0: i32) -> (i32, i32) {
    %c0_i32 = arith.constant 0 : i32
    %c0_i32_0 = arith.constant 0 : i32
    %c0_i32_1 = arith.constant 0 : i32
    return %c0_i32, %c0_i32_0 : i32, i32
  }
  func.func @transform_3(%arg0: i32) -> (i32, i32) {
    %c0_i32 = arith.constant 0 : i32
    %c0_i32_0 = arith.constant 0 : i32
    %c0_i32_1 = arith.constant 0 : i32
    return %c0_i32, %c0_i32_0 : i32, i32
  }
  func.func @transform_4(%arg0: i32) -> (i32, i32) {
    %c0_i32 = arith.constant 0 : i32
    %c0_i32_0 = arith.constant 0 : i32
    return %arg0, %c0_i32 : i32, i32
  }
  func.func @transform_5(%arg0: i32) -> (i32, i32) {
    %c0_i32 = arith.constant 0 : i32
    %c0_i32_0 = arith.constant 0 : i32
    return %arg0, %c0_i32 : i32, i32
  }
}

</mosaic_0001>

<llo_original>
// kernel: tpu_custom_call.1
$region0: #{tpu_custom_call.1}
  #allocation0 [shape = 'u32[]', space=smem, size = 0x4, offset = 0x4, fixed_abs, tag = 'smem constant byte address 0x4 - core index']
  #allocation1 [shape = 'u32[144,128]{1,0:T(1,128)}', space=vmem, size = 0x12000, scoped, tag = 'internal scratch']
  %s0 = inlined_call_operand.hbm [shape: f32[16,128], index: 0, kind: input, shape index: {}]
  %s1 = inlined_call_operand.hbm [shape: f32[16,128], index: 1, kind: input, shape index: {}]
  %s2 = inlined_call_operand.hbm [shape: bf16[128,256], index: 2, kind: input, shape index: {}]
  %s3 = inlined_call_operand.vmem [shape: f32[1,128], index: 3, kind: input, shape index: {}]
  %s4 = inlined_call_operand.hbm [shape: f32[8,128], index: 4, kind: output, shape index: {0}]
  %s5 = inlined_call_operand.hbm [shape: f32[8,128], index: 5, kind: output, shape index: {1}]
  %6 = xla_tuple %s4, %s5
  %s7 = sld [smem:[#allocation0]]
  $region46: #{tpu_custom_call.1} parent=0
    _
  %s9 = ssub.s32 1, %s7
  %s10 = scalar_select 0, %s9, %s7
  $region1: #{tpu_custom_call.1} parent=0
    #allocation2 [shape = 'u8[8192]{0}', space=vmem, size = 0x2000, scoped, tag = 'input window, operand 0, single buffered']
    #allocation3 [shape = 's32[1]{0}', space=sflag, size = 0x4, scoped, tag = 'scoped memory for tpu_custom_call.1']
    #allocation4 [shape = 's32[1]{0}', space=sflag, size = 0x4, scoped, tag = 'scoped memory for tpu_custom_call.1']
    #allocation5 [shape = 'u8[8192]{0}', space=vmem, size = 0x2000, scoped, tag = 'input window, operand 1, single buffered']
    #allocation6 [shape = 's32[1]{0}', space=sflag, size = 0x4, scoped, tag = 'scoped memory for tpu_custom_call.1']
    #allocation7 [shape = 'u8[65536]{0}', space=vmem, size = 0x10000, scoped, tag = 'input window, operand 2, single buffered']
    #allocation8 [shape = 'u8[4096]{0}', space=vmem, size = 0x1000, scoped, tag = 'output window, operand 0, single buffered']
    #allocation9 [shape = 'u8[4096]{0}', space=vmem, size = 0x1000, scoped, tag = 'output window, operand 1, single buffered']
    #allocation10 [shape = 's32[1]{0}', space=sflag, size = 0x4, scoped, tag = 'scoped memory for tpu_custom_call.1']
    %11 = vsyncpa [#allocation3], 0
    %12 = vsyncpa [#allocation6], 0
    %13 = vsyncpa [#allocation4], 0
    %14 = vsyncpa [#allocation10], 0
    // Predicated region
    $region2: #{tpu_custom_call.1} parent=1 // pred_check
      _
    $region3: #{tpu_custom_call.1} parent=1 // pred_check_branch
      %16 = sbr.rel (0) target = $region5
    $region4: #{tpu_custom_call.1} parent=1 // pred_region
      %s18 = ssub.s32 256, 256
      %19 = vsyncadd [#allocation3], %s18
      %s20 = sshll.u32 [#allocation2], 4
      %s21 = int_to_ptr.vmem [resolvable:$true] %s20
      %26 = dma.hbm_to_vmem [thread:$0]  %s0, 256, %s21, [#allocation3], 128, 128, 8
    $region5: #{tpu_custom_call.1} parent=1 // pred_fallthru
      _
    // Predicated region
    $region6: #{tpu_custom_call.1} parent=1 // pred_check
      _
    $region7: #{tpu_custom_call.1} parent=1 // pred_check_branch
      %28 = sbr.rel (0) target = $region9
    $region8: #{tpu_custom_call.1} parent=1 // pred_region
      %s30 = ssub.s32 256, 256
      %31 = vsyncadd [#allocation6], %s30
      %s32 = sshll.u32 [#allocation5], 4
      %s33 = int_to_ptr.vmem [resolvable:$true] %s32
      %38 = dma.hbm_to_vmem [thread:$0]  %s1, 256, %s33, [#allocation6], 128, 128, 8
    $region9: #{tpu_custom_call.1} parent=1 // pred_fallthru
      _
    // Predicated region
    $region10: #{tpu_custom_call.1} parent=1 // pred_check
      _
    $region11: #{tpu_custom_call.1} parent=1 // pred_check_branch
      %40 = sbr.rel (0) target = $region13
    $region12: #{tpu_custom_call.1} parent=1 // pred_region
      %s42 = ssub.s32 2048, 2048
      %43 = vsyncadd [#allocation6], %s42
      %s44 = sshll.u32 [#allocation7], 4
      %s45 = int_to_ptr.vmem [resolvable:$true] %s44
      %50 = dma.hbm_to_vmem [thread:$0]  %s2, 2048, %s45, [#allocation6], 128, 128, 8
    $region13: #{tpu_custom_call.1} parent=1 // pred_fallthru
      _
    // Predicated region
    $region14: #{tpu_custom_call.1} parent=1 // pred_check
      _
    $region15: #{tpu_custom_call.1} parent=1 // pred_check_branch
      %52 = sbr.rel (0) target = $region17
    $region16: #{tpu_custom_call.1} parent=1 // pred_region
      _
    $region17: #{tpu_custom_call.1} parent=1 // pred_fallthru
      _
    // Predicated region
    $region18: #{tpu_custom_call.1} parent=1 // pred_check
      _
    $region19: #{tpu_custom_call.1} parent=1 // pred_check_branch
      %54 = sbr.rel (0) target = $region21
    $region20: #{tpu_custom_call.1} parent=1 // pred_region
      %55 = dma.done [#allocation3], 256
    $region21: #{tpu_custom_call.1} parent=1 // pred_fallthru
      _
    // Predicated region
    $region22: #{tpu_custom_call.1} parent=1 // pred_check
      _
    $region23: #{tpu_custom_call.1} parent=1 // pred_check_branch
      %57 = sbr.rel (0) target = $region25
    $region24: #{tpu_custom_call.1} parent=1 // pred_region
      %58 = dma.done [#allocation6], 256
    $region25: #{tpu_custom_call.1} parent=1 // pred_fallthru
      _
    // Predicated region
    $region26: #{tpu_custom_call.1} parent=1 // pred_check
      _
    $region27: #{tpu_custom_call.1} parent=1 // pred_check_branch
      %60 = sbr.rel (0) target = $region29
    $region28: #{tpu_custom_call.1} parent=1 // pred_region
      %61 = dma.done [#allocation6], 2048
    $region29: #{tpu_custom_call.1} parent=1 // pred_fallthru
      _
    %v63 = vld [vmem:[#allocation2] sm:$0xff]
    %v64 = vld [vmem:[#allocation2 + $0x8] sm:$0xff]
    %v65 = vld [vmem:[#allocation5] sm:$0xff]
    %v66 = vld [vmem:[#allocation5 + $0x8] sm:$0xff]
    %v67 = vsub.f32 %v63, %v65
    %v68 = vsub.f32 %v64, %v66
    %v69 = vmul.f32 %v67, %v67
    %v70 = vmul.f32 %v68, %v68
    %v71 = vadd.f32 %v69, %v70
    %v72 = vrot.slane %v71, 4
    %v73 = vadd.f32 %v71, %v72
    %v74 = vrot.slane %v73, 2
    %v75 = vadd.f32 %v73, %v74
    %v76 = vrot.slane %v75, 1
    %v77 = vadd.f32 %v75, %v76
    %v78 = vand.u32 2147483647, %v63
    %v79 = vand.u32 2147483647, %v64
    %v80 = vadd.f32 %v78, 1.0
    %v81 = vlog2.pop %v80
    %v82 = vmul.f32 %v81, 0.6931472
    %v83 = vmul.f32 -0.5, %v78
    %v84 = vadd.f32 %v83, 1.0
    %v85 = vmul.f32 %v84, %v78
    %v86 = vand.u32 2147483647, %v78
    %vm87 = vcmp.lt.f32.partialorder %v86, 0.0004427343
    %v88 = vsel %vm87, %v85, %v82
    %v89 = vadd.f32 %v79, 1.0
    %v90 = vlog2.pop %v89
    %v91 = vmul.f32 %v90, 0.6931472
    %v92 = vmul.f32 -0.5, %v79
    %v93 = vadd.f32 %v92, 1.0
    %v94 = vmul.f32 %v93, %v79
    %v95 = vand.u32 2147483647, %v79
    %vm96 = vcmp.lt.f32.partialorder %v95, 0.0004427343
    %v97 = vsel %vm96, %v94, %v91
    %v98 = vand.u32 2147483647, %v65
    %v99 = vand.u32 2147483647, %v66
    %v100 = vadd.f32 %v98, 1.0
    %v101 = vlog2.pop %v100
    %v102 = vmul.f32 %v101, 0.6931472
    %v103 = vmul.f32 -0.5, %v98
    %v104 = vadd.f32 %v103, 1.0
    %v105 = vmul.f32 %v104, %v98
    %v106 = vand.u32 2147483647, %v98
    %vm107 = vcmp.lt.f32.partialorder %v106, 0.0004427343
    %v108 = vsel %vm107, %v105, %v102
    %v109 = vadd.f32 %v99, 1.0
    %v110 = vlog2.pop %v109
    %v111 = vmul.f32 %v110, 0.6931472
    %v112 = vmul.f32 -0.5, %v99
    %v113 = vadd.f32 %v112, 1.0
    %v114 = vmul.f32 %v113, %v99
    %v115 = vand.u32 2147483647, %v99
    %vm116 = vcmp.lt.f32.partialorder %v115, 0.0004427343
    %v117 = vsel %vm116, %v114, %v111
    %v118 = vsub.f32 %v88, %v108
    %v119 = vsub.f32 %v97, %v117
    %v120 = vmul.f32 %v118, %v118
    %v121 = vmul.f32 %v119, %v119
    %v122 = vadd.f32 %v120, %v121
    %v123 = vrot.slane %v122, 4
    %v124 = vadd.f32 %v122, %v123
    %v125 = vrot.slane %v124, 2
    %v126 = vadd.f32 %v124, %v125
    %v127 = vrot.slane %v126, 1
    %v128 = vadd.f32 %v126, %v127
    %v129 = vld [vmem:[#allocation7] sm:$0xff]
    %v130 = vld [vmem:[#allocation7 + $0x8] sm:$0xff]
    %v131 = vld [vmem:[#allocation7 + $0x10] sm:$0xff]
    %v132 = vld [vmem:[#allocation7 + $0x18] sm:$0xff]
    %v133 = vld [vmem:[#allocation7 + $0x20] sm:$0xff]
    %v134 = vld [vmem:[#allocation7 + $0x28] sm:$0xff]
    %v135 = vld [vmem:[#allocation7 + $0x30] sm:$0xff]
    %v136 = vld [vmem:[#allocation7 + $0x38] sm:$0xff]
    %v137 = vld [vmem:[#allocation7 + $0x40] sm:$0xff]
    %v138 = vld [vmem:[#allocation7 + $0x48] sm:$0xff]
    %v139 = vld [vmem:[#allocation7 + $0x50] sm:$0xff]
    %v140 = vld [vmem:[#allocation7 + $0x58] sm:$0xff]
    %v141 = vld [vmem:[#allocation7 + $0x60] sm:$0xff]
    %v142 = vld [vmem:[#allocation7 + $0x68] sm:$0xff]
    %v143 = vld [vmem:[#allocation7 + $0x70] sm:$0xff]
    %v144 = vld [vmem:[#allocation7 + $0x78] sm:$0xff]
    %v145 = vpack.c.bf16 %v64, %v63
    %v162 = vunpack.c.l.b16 %v129
    %v163 = vunpack.c.h.b16 %v129
    %v164 = vunpack.c.l.b16 %v130
    %v165 = vunpack.c.h.b16 %v130
    %v166 = vunpack.c.l.b16 %v131
    %v167 = vunpack.c.h.b16 %v131
    %v168 = vunpack.c.l.b16 %v132
    %v169 = vunpack.c.h.b16 %v132
    %v170 = vunpack.c.l.b16 %v133
    %v171 = vunpack.c.h.b16 %v133
    %v172 = vunpack.c.l.b16 %v134
    %v173 = vunpack.c.h.b16 %v134
    %v174 = vunpack.c.l.b16 %v135
    %v175 = vunpack.c.h.b16 %v135
    %v176 = vunpack.c.l.b16 %v136
    %v177 = vunpack.c.h.b16 %v136
    %v178 = vunpack.c.l.b16 %v137
    %v179 = vunpack.c.h.b16 %v137
    %v180 = vunpack.c.l.b16 %v138
    %v181 = vunpack.c.h.b16 %v138
    %v182 = vunpack.c.l.b16 %v139
    %v183 = vunpack.c.h.b16 %v139
    %v184 = vunpack.c.l.b16 %v140
    %v185 = vunpack.c.h.b16 %v140
    %v186 = vunpack.c.l.b16 %v141
    %v187 = vunpack.c.h.b16 %v141
    %v188 = vunpack.c.l.b16 %v142
    %v189 = vunpack.c.h.b16 %v142
    %v190 = vunpack.c.l.b16 %v143
    %v191 = vunpack.c.h.b16 %v143
    %v192 = vunpack.c.l.b16 %v144
    %v193 = vunpack.c.h.b16 %v144
    %v194 = vpack.c.b16 %v164, %v162
    %v195 = vpack.c.b16 %v165, %v163
    %v196 = vpack.c.b16 %v168, %v166
    %v197 = vpack.c.b16 %v169, %v167
    %v198 = vpack.c.b16 %v172, %v170
    %v199 = vpack.c.b16 %v173, %v171
    %v200 = vpack.c.b16 %v176, %v174
    %v201 = vpack.c.b16 %v177, %v175
    %v202 = vpack.c.b16 %v180, %v178
    %v203 = vpack.c.b16 %v181, %v179
    %v204 = vpack.c.b16 %v184, %v182
    %v205 = vpack.c.b16 %v185, %v183
    %v206 = vpack.c.b16 %v188, %v186
    %v207 = vpack.c.b16 %v189, %v187
    %v208 = vpack.c.b16 %v192, %v190
    %v209 = vpack.c.b16 %v193, %v191
    %226 = vmatprep.subr.bf16.mxu0 %v195
    %227 = vmatpush1.bf16.msra.mxu0 %v194
    %228 = vmatprep.subr.bf16.mxu0 %v197
    %229 = vmatpush1.bf16.msra.mxu0 %v196
    %230 = vmatprep.subr.bf16.mxu0 %v199
    %231 = vmatpush1.bf16.msra.mxu0 %v198
    %232 = vmatprep.subr.bf16.mxu0 %v201
    %233 = vmatpush1.bf16.msra.mxu0 %v200
    %234 = vmatprep.subr.bf16.mxu0 %v203
    %235 = vmatpush1.bf16.msra.mxu0 %v202
    %236 = vmatprep.subr.bf16.mxu0 %v205
    %237 = vmatpush1.bf16.msra.mxu0 %v204
    %238 = vmatprep.subr.bf16.mxu0 %v207
    %239 = vmatpush1.bf16.msra.mxu0 %v206
    %240 = vmatprep.subr.bf16.mxu0 %v209
    %241 = vmatpush1.bf16.msra.mxu0 %v208
    %242 = vmatprep.subr.bf16.mxu0 0
    %243 = vmatpush1.bf16.msra.mxu0 0
    %244 = vmatprep.subr.bf16.mxu0 0
    %245 = vmatpush1.bf16.msra.mxu0 0
    %246 = vmatprep.subr.bf16.mxu0 0
    %247 = vmatpush1.bf16.msra.mxu0 0
    %248 = vmatprep.subr.bf16.mxu0 0
    %249 = vmatpush1.bf16.msra.mxu0 0
    %250 = vmatprep.subr.bf16.mxu0 0
    %251 = vmatpush1.bf16.msra.mxu0 0
    %252 = vmatprep.subr.bf16.mxu0 0
    %253 = vmatpush1.bf16.msra.mxu0 0
    %254 = vmatprep.subr.bf16.mxu0 0
    %255 = vmatpush1.bf16.msra.mxu0 0
    %256 = vmatprep.subr.bf16.mxu0 0
    %257 = vmatpush1.bf16.msra.mxu0 0
    %258 = vmatprep.mubr.bf16.mxu0 0
    %259 = vmatmul.mubr.bf16.gmra.mrb[0].mxu0 %v145
    %v260 = vpop.f32.mrb[0].mxu0
    %v261 = vadd.f32 0.0, %v260
    %v262 = vpop.f32.mrb[0].mxu0
    %v263 = vadd.f32 0.0, %v262
    %v264 = vpop.f32.mrb[0].mxu0
    %v265 = vadd.f32 0.0, %v264
    %v266 = vpop.f32.mrb[0].mxu0
    %v267 = vadd.f32 0.0, %v266
    %268 = vdwg.mxu0
    %v269 = vpack.c.bf16 %v66, %v65
    %270 = vmatprep.subr.bf16.mxu0 %v195
    %271 = vmatpush1.bf16.msra.mxu0 %v194
    %272 = vmatprep.subr.bf16.mxu0 %v197
    %273 = vmatpush1.bf16.msra.mxu0 %v196
    %274 = vmatprep.subr.bf16.mxu0 %v199
    %275 = vmatpush1.bf16.msra.mxu0 %v198
    %276 = vmatprep.subr.bf16.mxu0 %v201
    %277 = vmatpush1.bf16.msra.mxu0 %v200
    %278 = vmatprep.subr.bf16.mxu0 %v203
    %279 = vmatpush1.bf16.msra.mxu0 %v202
    %280 = vmatprep.subr.bf16.mxu0 %v205
    %281 = vmatpush1.bf16.msra.mxu0 %v204
    %282 = vmatprep.subr.bf16.mxu0 %v207
    %283 = vmatpush1.bf16.msra.mxu0 %v206
    %284 = vmatprep.subr.bf16.mxu0 %v209
    %285 = vmatpush1.bf16.msra.mxu0 %v208
    %286 = vmatprep.subr.bf16.mxu0 0
    %287 = vmatpush1.bf16.msra.mxu0 0
    %288 = vmatprep.subr.bf16.mxu0 0
    %289 = vmatpush1.bf16.msra.mxu0 0
    %290 = vmatprep.subr.bf16.mxu0 0
    %291 = vmatpush1.bf16.msra.mxu0 0
    %292 = vmatprep.subr.bf16.mxu0 0
    %293 = vmatpush1.bf16.msra.mxu0 0
    %294 = vmatprep.subr.bf16.mxu0 0
    %295 = vmatpush1.bf16.msra.mxu0 0
    %296 = vmatprep.subr.bf16.mxu0 0
    %297 = vmatpush1.bf16.msra.mxu0 0
    %298 = vmatprep.subr.bf16.mxu0 0
    %299 = vmatpush1.bf16.msra.mxu0 0
    %300 = vmatprep.subr.bf16.mxu0 0
    %301 = vmatpush1.bf16.msra.mxu0 0
    %302 = vmatprep.mubr.bf16.mxu0 0
    %303 = vmatmul.mubr.bf16.gmra.mrb[0].mxu0 %v269
    %v304 = vpop.f32.mrb[0].mxu0
    %v305 = vadd.f32 0.0, %v304
    %v306 = vpop.f32.mrb[0].mxu0
    %v307 = vadd.f32 0.0, %v306
    %v308 = vpop.f32.mrb[0].mxu0
    %v309 = vadd.f32 0.0, %v308
    %v310 = vpop.f32.mrb[0].mxu0
    %v311 = vadd.f32 0.0, %v310
    %312 = vdwg.mxu0
    %v313 = vmul.f32 %v261, %v261
    %v314 = vmul.f32 %v265, %v265
    %v315 = vmul.f32 %v263, %v263
    %v316 = vmul.f32 %v267, %v267
    %v317 = vadd.f32 %v313, %v315
    %v318 = vadd.f32 %v314, %v316
    %v319 = vrsqrt.pop %v317
    %v320 = vmul.f32 %v317, %v319
    %vm321 = vcmp.eq.f32.partialorder %v317, inf
    %v322 = vsel %vm321, %v317, %v320
    %vm323 = vcmp.eq.f32.partialorder %v317, 0.0
    %v324 = vand.u32 %v317, 2147483648
    %v325 = vsel %vm323, %v324, %v322
    %v326 = vrsqrt.pop %v318
    %v327 = vmul.f32 %v318, %v326
    %vm328 = vcmp.eq.f32.partialorder %v318, inf
    %v329 = vsel %vm328, %v318, %v327
    %vm330 = vcmp.eq.f32.partialorder %v318, 0.0
    %v331 = vand.u32 %v318, 2147483648
    %v332 = vsel %vm330, %v331, %v329
    %v333 = vmul.f32 %v305, %v305
    %v334 = vmul.f32 %v309, %v309
    %v335 = vmul.f32 %v307, %v307
    %v336 = vmul.f32 %v311, %v311
    %v337 = vadd.f32 %v333, %v335
    %v338 = vadd.f32 %v334, %v336
    %v339 = vrsqrt.pop %v337
    %v340 = vmul.f32 %v337, %v339
    %vm341 = vcmp.eq.f32.partialorder %v337, inf
    %v342 = vsel %vm341, %v337, %v340
    %vm343 = vcmp.eq.f32.partialorder %v337, 0.0
    %v344 = vand.u32 %v337, 2147483648
    %v345 = vsel %vm343, %v344, %v342
    %v346 = vrsqrt.pop %v338
    %v347 = vmul.f32 %v338, %v346
    %vm348 = vcmp.eq.f32.partialorder %v338, inf
    %v349 = vsel %vm348, %v338, %v347
    %vm350 = vcmp.eq.f32.partialorder %v338, 0.0
    %v351 = vand.u32 %v338, 2147483648
    %v352 = vsel %vm350, %v351, %v349
    %v353 = vsub.f32 %v325, %v345
    %v354 = vsub.f32 %v332, %v352
    %v355 = vmul.f32 %v353, %v353
    %v356 = vmul.f32 %v354, %v354
    %v357 = vadd.f32 %v355, %v356
    %v358 = vrot.slane %v357, 4
    %v359 = vadd.f32 %v357, %v358
    %v360 = vrot.slane %v359, 2
    %v361 = vadd.f32 %v359, %v360
    %v362 = vrot.slane %v361, 1
    %v363 = vadd.f32 %v361, %v362
    %v364 = vld [vmem:[%s3] sm:$0x1]
    %v366 = vlaneseq
    %v367 = vshrl.u32 %v366, 7
    %v368 = vsub.s32 0, %v367
    %v369 = vrot.slane %v364, %v368
    %v371 = vmul.f32 %v325, %v369
    %v372 = vmul.f32 %v332, %v369
    %v373 = vadd.f32 %v371, %v372
    %v374 = vrot.slane %v373, 4
    %v375 = vadd.f32 %v373, %v374
    %v376 = vrot.slane %v375, 2
    %v377 = vadd.f32 %v375, %v376
    %v378 = vrot.slane %v377, 1
    %v379 = vadd.f32 %v377, %v378
    %v380 = vadd.f32 %v325, 1.0
    %v381 = vlog2.pop %v380
    %v382 = vmul.f32 %v381, 0.6931472
    %v383 = vmul.f32 -0.5, %v325
    %v384 = vadd.f32 %v383, 1.0
    %v385 = vmul.f32 %v384, %v325
    %v386 = vand.u32 2147483647, %v325
    %vm387 = vcmp.lt.f32.partialorder %v386, 0.0004427343
    %v388 = vsel %vm387, %v385, %v382
    %v389 = vadd.f32 %v332, 1.0
    %v390 = vlog2.pop %v389
    %v391 = vmul.f32 %v390, 0.6931472
    %v392 = vmul.f32 -0.5, %v332
    %v393 = vadd.f32 %v392, 1.0
    %v394 = vmul.f32 %v393, %v332
    %v395 = vand.u32 2147483647, %v332
    %vm396 = vcmp.lt.f32.partialorder %v395, 0.0004427343
    %v397 = vsel %vm396, %v394, %v391
    %v398 = vadd.f32 %v345, 1.0
    %v399 = vlog2.pop %v398
    %v400 = vmul.f32 %v399, 0.6931472
    %v401 = vmul.f32 -0.5, %v345
    %v402 = vadd.f32 %v401, 1.0
    %v403 = vmul.f32 %v402, %v345
    %v404 = vand.u32 2147483647, %v345
    %vm405 = vcmp.lt.f32.partialorder %v404, 0.0004427343
    %v406 = vsel %vm405, %v403, %v400
    %v407 = vadd.f32 %v352, 1.0
    %v408 = vlog2.pop %v407
    %v409 = vmul.f32 %v408, 0.6931472
    %v410 = vmul.f32 -0.5, %v352
    %v411 = vadd.f32 %v410, 1.0
    %v412 = vmul.f32 %v411, %v352
    %v413 = vand.u32 2147483647, %v352
    %vm414 = vcmp.lt.f32.partialorder %v413, 0.0004427343
    %v415 = vsel %vm414, %v412, %v409
    %v416 = vsub.f32 %v388, %v406
    %v417 = vsub.f32 %v397, %v415
    %v418 = vmul.f32 %v416, %v416
    %v419 = vmul.f32 %v417, %v417
    %v420 = vadd.f32 %v418, %v419
    %v421 = vrot.slane %v420, 4
    %v422 = vadd.f32 %v420, %v421
    %v423 = vrot.slane %v422, 2
    %v424 = vadd.f32 %v422, %v423
    %v425 = vrot.slane %v424, 1
    %v426 = vadd.f32 %v424, %v425
    %v427 = vlaneseq
    %v428 = vshrl.u32 %v427, 7
    %vm429 = vcmp.eq.s32.totalorder %v428, 0
    %v430 = vsel %vm429, %v77, 0.0
    %vm431 = vcmp.eq.s32.totalorder %v428, 1
    %v432 = vsel %vm431, %v128, 0.0
    %v433 = vadd.f32 %v430, %v432
    %434 = vst [vmem:[#allocation8] sm:$0xff] %v433
    %v435 = vsel %vm429, %v363, 0.0
    %v436 = vsel %vm431, %v379, 0.0
    %v437 = vadd.f32 %v435, %v436
    %vm438 = vcmp.eq.s32.totalorder %v428, 2
    %v439 = vsel %vm438, %v426, 0.0
    %v440 = vadd.f32 %v437, %v439
    %441 = vst [vmem:[#allocation9] sm:$0xff] %v440
    // Predicated region
    $region30: #{tpu_custom_call.1} parent=1 // pred_check
      _
    $region31: #{tpu_custom_call.1} parent=1 // pred_check_branch
      %443 = sbr.rel (0) target = $region33
    $region32: #{tpu_custom_call.1} parent=1 // pred_region
      %s445 = ssub.s32 128, 128
      %446 = vsyncadd [#allocation4], %s445
      %s448 = sshll.u32 [#allocation8], 4
      %s449 = int_to_ptr.vmem [resolvable:$true] %s448
      %451 = dma.vmem_to_hbm [thread:$0]  %s449, 128, %s4, [#allocation4]
    $region33: #{tpu_custom_call.1} parent=1 // pred_fallthru
      _
    // Predicated region
    $region34: #{tpu_custom_call.1} parent=1 // pred_check
      _
    $region35: #{tpu_custom_call.1} parent=1 // pred_check_branch
      %453 = sbr.rel (0) target = $region37
    $region36: #{tpu_custom_call.1} parent=1 // pred_region
      %s455 = ssub.s32 128, 128
      %456 = vsyncadd [#allocation10], %s455
      %s458 = sshll.u32 [#allocation9], 4
      %s459 = int_to_ptr.vmem [resolvable:$true] %s458
      %461 = dma.vmem_to_hbm [thread:$0]  %s459, 128, %s5, [#allocation10]
    $region37: #{tpu_custom_call.1} parent=1 // pred_fallthru
      _
    // Predicated region
    $region38: #{tpu_custom_call.1} parent=1 // pred_check
      _
    $region39: #{tpu_custom_call.1} parent=1 // pred_check_branch
      %463 = sbr.rel (0) target = $region41
    $region40: #{tpu_custom_call.1} parent=1 // pred_region
      %464 = dma.done [#allocation4], 128
    $region41: #{tpu_custom_call.1} parent=1 // pred_fallthru
      _
    // Predicated region
    $region42: #{tpu_custom_call.1} parent=1 // pred_check
      _
    $region43: #{tpu_custom_call.1} parent=1 // pred_check_branch
      %466 = sbr.rel (0) target = $region45
    $region44: #{tpu_custom_call.1} parent=1 // pred_region
      %467 = dma.done [#allocation10], 128
    $region45: #{tpu_custom_call.1} parent=1 // pred_fallthru
      _
    %468 = vsyncpa [#allocation3], 1
    %469 = vsyncpa [#allocation6], 1
    %470 = vsyncpa [#allocation4], 1
    %471 = vsyncpa [#allocation10], 1

</llo_original>
